<compile_context>
chip_gen: v5e
topology: v5e:2x2
jax: 0.10.0
libtpu: 0.0.40
codegen_flags: <defaults>
</compile_context>

<pallas_src>
import functools

import numpy as np
import jax
import jax.numpy as jnp
from jax import lax
from jax.experimental import pallas as pl

# ----- model hyper-parameters (small, consistent with the module) -----
B = 2             # batch
INPUT_SIZE = 8    # attention sequence length == Conv1d in_channels
FEATURE_NUM = 32  # attention model_dim       == Conv1d spatial length
NUM_HEADS = 2
OUT_SIZE = 16     # conv out_channels
NUM_CLASSES = 2
KERNEL_SIZES = (2, 3, 4)
NEG = -1e9


# ============================= fused Pallas kernel =============================

def fused_kernel(x_ref, wh0_ref, wh1_ref, bh0_ref, bh1_ref,
                 e0_ref, e1_ref, amask_ref, f0_ref, f1_ref,
                 woh0_ref, woh1_ref, bo_ref, lnw_ref, lnb_ref,
                 convw_ref, cmb_ref, fcwbig_ref, bsum_ref, fcb_ref,
                 o_ref, *, num_heads, model_dim, max_ksize):
    dph = model_dim // num_heads
    scale = float((dph // num_heads) ** (-0.5))   # matches `key.size(-1) // num_heads`

    x2 = x_ref[...]                                                    # (16, 32)

    # --- fused Q/K/V projection, one matmul per head-column-half -> (16, 48) each
    p0 = jnp.dot(x2, wh0_ref[...], preferred_element_type=jnp.float32) + bh0_ref[...]
    p1 = jnp.dot(x2, wh1_ref[...], preferred_element_type=jnp.float32) + bh1_ref[...]

    # --- stack into the PyTorch raw-view head layout (32, 48) with constant 0/1
    #     matmuls (MXU performs the row shuffle; no concats / reshapes / sub-vreg stores)
    qkv = (jnp.dot(e0_ref[...], p0, preferred_element_type=jnp.float32) +
           jnp.dot(e1_ref[...], p1, preferred_element_type=jnp.float32))
    q = qkv[:, 0:dph]                                                  # (32, 16)
    k = qkv[:, dph:2 * dph]
    v = qkv[:, 2 * dph:3 * dph]

    # --- all (batch*head) blocks at once: block-diag masked scores, softmax, P@V
    s = lax.dot_general(q, k, (((1,), (1,)), ((), ())),
                        preferred_element_type=jnp.float32) * scale + amask_ref[...]
    s = s - jnp.max(s, axis=-1, keepdims=True)
    p = jnp.exp(s)
    p = p * pl.reciprocal(jnp.sum(p, axis=-1, keepdims=True), approx=True)
    ctx = jnp.dot(p, v, preferred_element_type=jnp.float32)            # (32, 16)

    # --- inverse view + output projection (+ residual + LayerNorm)
    y = (jnp.dot(jnp.dot(f0_ref[...], ctx, preferred_element_type=jnp.float32),
                 woh0_ref[...], preferred_element_type=jnp.float32) +
         jnp.dot(jnp.dot(f1_ref[...], ctx, preferred_element_type=jnp.float32),
                 woh1_ref[...], preferred_element_type=jnp.float32) + bo_ref[...])
    xr = x2 + y
    mean = jnp.mean(xr, axis=-1, keepdims=True)
    var = jnp.mean((xr - mean) * (xr - mean), axis=-1, keepdims=True)
    out2 = (xr - mean) * lax.rsqrt(var + 1e-5) * lnw_ref[...] + lnb_ref[...]   # (16, 32)

    # --- all Conv1d taps for BOTH batches in ONE matmul against a host-packed
    #     batch-block-diagonal / tap-major weight.  Tap shifts = lane rolls of out2.
    shifted = [out2] + [jnp.roll(out2, -j, axis=1) for j in range(1, max_ksize)]
    ctx_shift = jnp.concatenate(shifted, axis=0)                        # (64, 32)
    acc = jnp.dot(convw_ref[...], ctx_shift,
                  preferred_element_type=jnp.float32)                   # (96, 32)
    acc = jnp.maximum(acc + cmb_ref[...], 0.0)   # + conv bias, -1e9 on invalid lanes, ReLU
    feats = jnp.max(acc, axis=-1, keepdims=True)                        # (96, 1) max-pool

    # --- FC + softmax fused across both batches; classes land on the output lanes
    logits = jnp.dot(bsum_ref[...], feats * fcwbig_ref[...],
                     preferred_element_type=jnp.float32) + fcb_ref[...]  # (B, 2)
    logits = logits - jnp.max(logits, axis=-1, keepdims=True)
    e = jnp.exp(logits)
    o_ref[...] = e / jnp.sum(e, axis=-1, keepdims=True)                  # exact softmax


# ============================= host-side packing =============================

def prepare_params(p):
    """One-time host-side packing of PyTorch-style params into the matmul-friendly
    constants the fused kernel consumes (done once, outside the forward)."""
    D, H, S, Bn = FEATURE_NUM, NUM_HEADS, INPUT_SIZE, B
    dph = D // H
    n_flat = Bn * S                          # 16 rows of the flattened (B*S, D) slab
    n_stk = Bn * H * S                       # 32 rows of the PyTorch head-view layout
    n_feat = OUT_SIZE * len(KERNEL_SIZES)    # 48
    maxk = max(KERNEL_SIZES)

    # fused per-column-half QKV weights / biases: (D, 3*dph) and (1, 3*dph)
    WqT, WkT, WvT = (np.asarray(p['wq']).T, np.asarray(p['wk']).T, np.asarray(p['wv']).T)
    bq, bk, bv = (np.asarray(p['bq']), np.asarray(p['bk']), np.asarray(p['bv']))
    w_h, b_h = [], []
    for a in range(H):
        sl = slice(a * dph, (a + 1) * dph)
        w_h.append(np.concatenate([WqT[:, sl], WkT[:, sl], WvT[:, sl]], axis=1))
        b_h.append(np.concatenate([bq[:, sl], bk[:, sl], bv[:, sl]], axis=1))

    # constant 0/1 selectors for the PyTorch .view() head split and its inverse:
    # stacked row R <-> flat row t(R) = (R//S)*(S//H) + (R%S)//H, column half a(R) = R%H
    E = np.zeros((H, n_stk, n_flat), np.float32)
    for R in range(n_stk):
        t = (R // S) * (S // H) + (R % S) // H
        E[R % H, R, t] = 1.0
    F = np.transpose(E, (0, 2, 1))

    # block-diagonal additive attention mask (0 inside a (batch,head) block, -1e9 off)
    blk = np.arange(n_stk) // S
    amask = np.where(blk[:, None] == blk[None, :], 0.0, NEG).astype(np.float32)

    # output-projection weight split by input column-half
    WoT = np.asarray(p['wo']).T
    wo_h = [WoT[a * dph:(a + 1) * dph, :] for a in range(H)]

    # conv: batch-block-diagonal, tap-major folded weight (Bn*48, maxk*16) and the
    # combined (bias + invalid-lane mask) constant (Bn*48, D)
    conv_w_fold = np.zeros((Bn * n_feat, maxk * n_flat), np.float32)
    conv_maskbias = np.zeros((Bn * n_feat, D), np.float32)
    for b in range(Bn):
        for k_idx, ksz in enumerate(KERNEL_SIZES):
            w = np.asarray(p['conv%d_w' % ksz])            # (OUT_SIZE, S, ksz)
            bias = np.asarray(p['conv%d_b' % ksz])         # (OUT_SIZE,)
            r0 = b * n_feat + k_idx * OUT_SIZE
            lout = D - ksz + 1
            conv_maskbias[r0:r0 + OUT_SIZE, :lout] = bias[:, None]
            conv_maskbias[r0:r0 + OUT_SIZE, lout:] = NEG
            for j in range(ksz):
                c0 = j * n_flat + b * S
                conv_w_fold[r0:r0 + OUT_SIZE, c0:c0 + S] = w[:, :, j]

    # FC fused across batches
    fc_w = np.asarray(p['fc_w'])                           # (NUM_CLASSES, 48)
    fc_w_big = np.tile(fc_w.T, (Bn, 1))                    # (Bn*48, NUM_CLASSES)
    batch_sum = np.zeros((Bn, Bn * n_feat), np.float32)
    for b in range(Bn):
        batch_sum[b, b * n_feat:(b + 1) * n_feat] = 1.0

    as_f32 = lambda a: jnp.asarray(a, jnp.float32)
    return {
        'w_h0': as_f32(w_h[0]), 'w_h1': as_f32(w_h[1]),
        'b_h0': as_f32(b_h[0]), 'b_h1': as_f32(b_h[1]),
        'e0': as_f32(E[0]), 'e1': as_f32(E[1]),
        'amask': as_f32(amask),
        'f0': as_f32(F[0]), 'f1': as_f32(F[1]),
        'wo_h0': as_f32(wo_h[0]), 'wo_h1': as_f32(wo_h[1]),
        'bo': as_f32(p['bo']),
        'ln_w': as_f32(p['ln_w']), 'ln_b': as_f32(p['ln_b']),
        'conv_w_fold': as_f32(conv_w_fold),
        'conv_maskbias': as_f32(conv_maskbias),
        'fc_w_big': as_f32(fc_w_big),
        'batch_sum': as_f32(batch_sum),
        'fc_b': as_f32(np.asarray(p['fc_b']).reshape(1, NUM_CLASSES)),
    }


# ============================= wrapper =============================

@jax.jit
def mult_att_cnn_forward(x, prep):
    bx, seq, dim = x.shape
    x2 = x.reshape(bx * seq, dim)
    kern = functools.partial(fused_kernel, num_heads=NUM_HEADS, model_dim=dim,
                             max_ksize=max(KERNEL_SIZES))
    return pl.pallas_call(
        kern,
        out_shape=jax.ShapeDtypeStruct((bx, NUM_CLASSES), jnp.float32),
    )(x2, prep['w_h0'], prep['w_h1'], prep['b_h0'], prep['b_h1'],
      prep['e0'], prep['e1'], prep['amask'], prep['f0'], prep['f1'],
      prep['wo_h0'], prep['wo_h1'], prep['bo'], prep['ln_w'], prep['ln_b'],
      prep['conv_w_fold'], prep['conv_maskbias'], prep['fc_w_big'],
      prep['batch_sum'], prep['fc_b'])


# ============================= reference (pure JAX) =============================

@jax.jit
def reference_forward(x, p):
    Bx, S, D = x.shape
    H = NUM_HEADS
    dph = D // H
    x2 = x.reshape(Bx * S, D)
    q = x2 @ p['wq'].T + p['bq']
    k = x2 @ p['wk'].T + p['bk']
    v = x2 @ p['wv'].T + p['bv']
    qh, kh, vh = (t.reshape(Bx * H, S, dph) for t in (q, k, v))
    scale = (dph // H) ** (-0.5)
    att = jax.nn.softmax(jnp.einsum('bqd,bkd->bqk', qh, kh) * scale, axis=-1)
    ctx = jnp.einsum('bqk,bkd->bqd', att, vh).reshape(Bx * S, D)
    out = ctx @ p['wo'].T + p['bo'] + x2
    mean = out.mean(-1, keepdims=True)
    var = ((out - mean) ** 2).mean(-1, keepdims=True)
    out = (out - mean) / jnp.sqrt(var + 1e-5) * p['ln_w'] + p['ln_b']
    context = out.reshape(Bx, S, D)
    feats = []
    for name in ('conv2', 'conv3', 'conv4'):
        y = lax.conv_general_dilated(context, p[name + '_w'], window_strides=(1,),
                                     padding='VALID',
                                     dimension_numbers=('NCH', 'OIH', 'NCH'))
        y = y + p[name + '_b'][None, :, None]
        y = jnp.maximum(y, 0.0)
        feats.append(jnp.max(y, axis=-1))
    conv = jnp.concatenate(feats, axis=1)
    logits = conv @ p['fc_w'].T + p['fc_b']
    return jax.nn.softmax(logits, axis=-1)


# ============================= params & main =============================

def init_params(key):
    D = FEATURE_NUM
    ks = jax.random.split(key, 16)
    w = lambda k_, shape, s=0.1: jax.random.normal(k_, shape, jnp.float32) * s
    return {
        'wq': w(ks[0], (D, D)), 'bq': w(ks[1], (1, D)),
        'wk': w(ks[2], (D, D)), 'bk': w(ks[3], (1, D)),
        'wv': w(ks[4], (D, D)), 'bv': w(ks[5], (1, D)),
        'wo': w(ks[6], (D, D)), 'bo': w(ks[7], (1, D)),
        'ln_w': jnp.ones((1, D), jnp.float32),
        'ln_b': jnp.zeros((1, D), jnp.float32),
        'conv2_w': w(ks[8], (OUT_SIZE, INPUT_SIZE, 2)), 'conv2_b': w(ks[9], (OUT_SIZE,)),
        'conv3_w': w(ks[10], (OUT_SIZE, INPUT_SIZE, 3)), 'conv3_b': w(ks[11], (OUT_SIZE,)),
        'conv4_w': w(ks[12], (OUT_SIZE, INPUT_SIZE, 4)), 'conv4_b': w(ks[13], (OUT_SIZE,)),
        'fc_w': w(ks[14], (NUM_CLASSES, OUT_SIZE * 3)), 'fc_b': w(ks[15], (1, NUM_CLASSES)),
    }


if __name__ == "__main__":
    key = jax.random.PRNGKey(0)
    k_x, k_p = jax.random.split(key)
    x = jax.random.normal(k_x, (B, INPUT_SIZE, FEATURE_NUM), jnp.float32)
    params = init_params(k_p)
    prep = prepare_params(params)          # one-time weight packing (not per forward)

    out = jax.block_until_ready(mult_att_cnn_forward(x, prep))
    ref = jax.block_until_ready(reference_forward(x, params))

    assert out.shape == (B, NUM_CLASSES), out.shape
    assert jnp.allclose(jnp.sum(out, axis=1), 1.0, atol=1e-4)
    assert jnp.allclose(out, ref, atol=2e-2, rtol=2e-2), (out, ref)

    print("KERNEL_OK")
</pallas_src>

<mosaic_0001>
module attributes {stable_mosaic.version = 11 : i64} {
  func.func @fused_kernel(%arg0: memref<16x32xf32, #tpu.memory_space<vmem>>, %arg1: memref<32x48xf32, #tpu.memory_space<vmem>>, %arg2: memref<32x48xf32, #tpu.memory_space<vmem>>, %arg3: memref<1x48xf32, #tpu.memory_space<vmem>>, %arg4: memref<1x48xf32, #tpu.memory_space<vmem>>, %arg5: memref<32x16xf32, #tpu.memory_space<vmem>>, %arg6: memref<32x16xf32, #tpu.memory_space<vmem>>, %arg7: memref<32x32xf32, #tpu.memory_space<vmem>>, %arg8: memref<16x32xf32, #tpu.memory_space<vmem>>, %arg9: memref<16x32xf32, #tpu.memory_space<vmem>>, %arg10: memref<16x32xf32, #tpu.memory_space<vmem>>, %arg11: memref<16x32xf32, #tpu.memory_space<vmem>>, %arg12: memref<1x32xf32, #tpu.memory_space<vmem>>, %arg13: memref<1x32xf32, #tpu.memory_space<vmem>>, %arg14: memref<1x32xf32, #tpu.memory_space<vmem>>, %arg15: memref<96x64xf32, #tpu.memory_space<vmem>>, %arg16: memref<96x32xf32, #tpu.memory_space<vmem>>, %arg17: memref<96x2xf32, #tpu.memory_space<vmem>>, %arg18: memref<2x96xf32, #tpu.memory_space<vmem>>, %arg19: memref<1x2xf32, #tpu.memory_space<vmem>>, %arg20: memref<2x2xf32, #tpu.memory_space<vmem>>) attributes {dimension_semantics = [], scalar_prefetch = 0 : i64, scratch_operands = 0 : i64, tpu.core_type = #tpu.core_type<tc>} {
    %c0 = arith.constant 0 : index
    %c0_0 = arith.constant 0 : index
    %0 = vector.load %arg0[%c0, %c0_0] : memref<16x32xf32, #tpu.memory_space<vmem>>, vector<16x32xf32>
    %c0_1 = arith.constant 0 : index
    %c0_2 = arith.constant 0 : index
    %1 = vector.load %arg1[%c0_1, %c0_2] : memref<32x48xf32, #tpu.memory_space<vmem>>, vector<32x48xf32>
    %cst = arith.constant dense<0.000000e+00> : vector<16x48xf32>
    %2 = tpu.matmul %0, %1, %cst {dimension_numbers = #tpu.dot_dimension_numbers<[1], [0], [0], [1], [0, 0, 1, 1], [], []>} : vector<16x32xf32>, vector<32x48xf32>, vector<16x48xf32> -> vector<16x48xf32>
    %c0_3 = arith.constant 0 : index
    %c0_4 = arith.constant 0 : index
    %3 = vector.load %arg3[%c0_3, %c0_4] : memref<1x48xf32, #tpu.memory_space<vmem>>, vector<1x48xf32>
    %4 = vector.broadcast %3 : vector<1x48xf32> to vector<16x48xf32>
    %5 = arith.addf %2, %4 : vector<16x48xf32>
    %c0_5 = arith.constant 0 : index
    %c0_6 = arith.constant 0 : index
    %6 = vector.load %arg2[%c0_5, %c0_6] : memref<32x48xf32, #tpu.memory_space<vmem>>, vector<32x48xf32>
    %cst_7 = arith.constant dense<0.000000e+00> : vector<16x48xf32>
    %7 = tpu.matmul %0, %6, %cst_7 {dimension_numbers = #tpu.dot_dimension_numbers<[1], [0], [0], [1], [0, 0, 1, 1], [], []>} : vector<16x32xf32>, vector<32x48xf32>, vector<16x48xf32> -> vector<16x48xf32>
    %c0_8 = arith.constant 0 : index
    %c0_9 = arith.constant 0 : index
    %8 = vector.load %arg4[%c0_8, %c0_9] : memref<1x48xf32, #tpu.memory_space<vmem>>, vector<1x48xf32>
    %9 = vector.broadcast %8 : vector<1x48xf32> to vector<16x48xf32>
    %10 = arith.addf %7, %9 : vector<16x48xf32>
    %c0_10 = arith.constant 0 : index
    %c0_11 = arith.constant 0 : index
    %11 = vector.load %arg5[%c0_10, %c0_11] : memref<32x16xf32, #tpu.memory_space<vmem>>, vector<32x16xf32>
    %cst_12 = arith.constant dense<0.000000e+00> : vector<32x48xf32>
    %12 = tpu.matmul %11, %5, %cst_12 {dimension_numbers = #tpu.dot_dimension_numbers<[1], [0], [0], [1], [0, 0, 1, 1], [], []>} : vector<32x16xf32>, vector<16x48xf32>, vector<32x48xf32> -> vector<32x48xf32>
    %c0_13 = arith.constant 0 : index
    %c0_14 = arith.constant 0 : index
    %13 = vector.load %arg6[%c0_13, %c0_14] : memref<32x16xf32, #tpu.memory_space<vmem>>, vector<32x16xf32>
    %cst_15 = arith.constant dense<0.000000e+00> : vector<32x48xf32>
    %14 = tpu.matmul %13, %10, %cst_15 {dimension_numbers = #tpu.dot_dimension_numbers<[1], [0], [0], [1], [0, 0, 1, 1], [], []>} : vector<32x16xf32>, vector<16x48xf32>, vector<32x48xf32> -> vector<32x48xf32>
    %15 = arith.addf %12, %14 : vector<32x48xf32>
    %16 = vector.extract_strided_slice %15 {offsets = [0, 0], sizes = [32, 16], strides = [1, 1]} : vector<32x48xf32> to vector<32x16xf32>
    %17 = vector.extract_strided_slice %15 {offsets = [0, 16], sizes = [32, 16], strides = [1, 1]} : vector<32x48xf32> to vector<32x16xf32>
    %18 = vector.extract_strided_slice %15 {offsets = [0, 32], sizes = [32, 16], strides = [1, 1]} : vector<32x48xf32> to vector<32x16xf32>
    %cst_16 = arith.constant dense<0.000000e+00> : vector<32x32xf32>
    %19 = tpu.matmul %16, %17, %cst_16 {dimension_numbers = #tpu.dot_dimension_numbers<[1], [1], [0], [0], [0, 0, 1, 0], [], []>} : vector<32x16xf32>, vector<32x16xf32>, vector<32x32xf32> -> vector<32x32xf32>
    %cst_17 = arith.constant 0.353553385 : f32
    %20 = vector.broadcast %cst_17 : f32 to vector<32x32xf32>
    %21 = arith.mulf %19, %20 : vector<32x32xf32>
    %c0_18 = arith.constant 0 : index
    %c0_19 = arith.constant 0 : index
    %22 = vector.load %arg7[%c0_18, %c0_19] : memref<32x32xf32, #tpu.memory_space<vmem>>, vector<32x32xf32>
    %23 = arith.addf %21, %22 : vector<32x32xf32>
    %cst_20 = arith.constant dense<0xFF800000> : vector<32xf32>
    %24 = vector.multi_reduction <maximumf>, %23, %cst_20 [1] : vector<32x32xf32> to vector<32xf32>
    %25 = vector.shape_cast %24 : vector<32xf32> to vector<32x1xf32>
    %26 = vector.broadcast %25 : vector<32x1xf32> to vector<32x32xf32>
    %27 = arith.subf %23, %26 : vector<32x32xf32>
    %28 = math.exp %27 : vector<32x32xf32>
    %cst_21 = arith.constant dense<0.000000e+00> : vector<32xf32>
    %29 = vector.multi_reduction <add>, %28, %cst_21 [1] : vector<32x32xf32> to vector<32xf32>
    %30 = vector.shape_cast %29 : vector<32xf32> to vector<32x1xf32>
    %31 = tpu.reciprocal %30 {approx = true} : vector<32x1xf32> -> vector<32x1xf32>
    %32 = vector.broadcast %31 : vector<32x1xf32> to vector<32x32xf32>
    %33 = arith.mulf %28, %32 : vector<32x32xf32>
    %cst_22 = arith.constant dense<0.000000e+00> : vector<32x16xf32>
    %34 = tpu.matmul %33, %18, %cst_22 {dimension_numbers = #tpu.dot_dimension_numbers<[1], [0], [0], [1], [0, 0, 1, 1], [], []>} : vector<32x32xf32>, vector<32x16xf32>, vector<32x16xf32> -> vector<32x16xf32>
    %c0_23 = arith.constant 0 : index
    %c0_24 = arith.constant 0 : index
    %35 = vector.load %arg8[%c0_23, %c0_24] : memref<16x32xf32, #tpu.memory_space<vmem>>, vector<16x32xf32>
    %cst_25 = arith.constant dense<0.000000e+00> : vector<16x16xf32>
    %36 = tpu.matmul %35, %34, %cst_25 {dimension_numbers = #tpu.dot_dimension_numbers<[1], [0], [0], [1], [0, 0, 1, 1], [], []>} : vector<16x32xf32>, vector<32x16xf32>, vector<16x16xf32> -> vector<16x16xf32>
    %c0_26 = arith.constant 0 : index
    %c0_27 = arith.constant 0 : index
    %37 = vector.load %arg10[%c0_26, %c0_27] : memref<16x32xf32, #tpu.memory_space<vmem>>, vector<16x32xf32>
    %cst_28 = arith.constant dense<0.000000e+00> : vector<16x32xf32>
    %38 = tpu.matmul %36, %37, %cst_28 {dimension_numbers = #tpu.dot_dimension_numbers<[1], [0], [0], [1], [0, 0, 1, 1], [], []>} : vector<16x16xf32>, vector<16x32xf32>, vector<16x32xf32> -> vector<16x32xf32>
    %c0_29 = arith.constant 0 : index
    %c0_30 = arith.constant 0 : index
    %39 = vector.load %arg9[%c0_29, %c0_30] : memref<16x32xf32, #tpu.memory_space<vmem>>, vector<16x32xf32>
    %cst_31 = arith.constant dense<0.000000e+00> : vector<16x16xf32>
    %40 = tpu.matmul %39, %34, %cst_31 {dimension_numbers = #tpu.dot_dimension_numbers<[1], [0], [0], [1], [0, 0, 1, 1], [], []>} : vector<16x32xf32>, vector<32x16xf32>, vector<16x16xf32> -> vector<16x16xf32>
    %c0_32 = arith.constant 0 : index
    %c0_33 = arith.constant 0 : index
    %41 = vector.load %arg11[%c0_32, %c0_33] : memref<16x32xf32, #tpu.memory_space<vmem>>, vector<16x32xf32>
    %cst_34 = arith.constant dense<0.000000e+00> : vector<16x32xf32>
    %42 = tpu.matmul %40, %41, %cst_34 {dimension_numbers = #tpu.dot_dimension_numbers<[1], [0], [0], [1], [0, 0, 1, 1], [], []>} : vector<16x16xf32>, vector<16x32xf32>, vector<16x32xf32> -> vector<16x32xf32>
    %43 = arith.addf %38, %42 : vector<16x32xf32>
    %c0_35 = arith.constant 0 : index
    %c0_36 = arith.constant 0 : index
    %44 = vector.load %arg12[%c0_35, %c0_36] : memref<1x32xf32, #tpu.memory_space<vmem>>, vector<1x32xf32>
    %45 = vector.broadcast %44 : vector<1x32xf32> to vector<16x32xf32>
    %46 = arith.addf %43, %45 : vector<16x32xf32>
    %47 = arith.addf %0, %46 : vector<16x32xf32>
    %cst_37 = arith.constant dense<0.000000e+00> : vector<16xf32>
    %48 = vector.multi_reduction <add>, %47, %cst_37 [1] : vector<16x32xf32> to vector<16xf32>
    %49 = vector.shape_cast %48 : vector<16xf32> to vector<16x1xf32>
    %cst_38 = arith.constant 3.200000e+01 : f32
    %50 = vector.broadcast %cst_38 : f32 to vector<16x1xf32>
    %51 = arith.divf %49, %50 : vector<16x1xf32>
    %52 = vector.broadcast %51 : vector<16x1xf32> to vector<16x32xf32>
    %53 = arith.subf %47, %52 : vector<16x32xf32>
    %54 = vector.broadcast %51 : vector<16x1xf32> to vector<16x32xf32>
    %55 = arith.subf %47, %54 : vector<16x32xf32>
    %56 = arith.mulf %53, %55 : vector<16x32xf32>
    %cst_39 = arith.constant dense<0.000000e+00> : vector<16xf32>
    %57 = vector.multi_reduction <add>, %56, %cst_39 [1] : vector<16x32xf32> to vector<16xf32>
    %58 = vector.shape_cast %57 : vector<16xf32> to vector<16x1xf32>
    %cst_40 = arith.constant 3.200000e+01 : f32
    %59 = vector.broadcast %cst_40 : f32 to vector<16x1xf32>
    %60 = arith.divf %58, %59 : vector<16x1xf32>
    %61 = vector.broadcast %51 : vector<16x1xf32> to vector<16x32xf32>
    %62 = arith.subf %47, %61 : vector<16x32xf32>
    %cst_41 = arith.constant 9.99999974E-6 : f32
    %63 = vector.broadcast %cst_41 : f32 to vector<16x1xf32>
    %64 = arith.addf %60, %63 : vector<16x1xf32>
    %65 = math.rsqrt %64 : vector<16x1xf32>
    %66 = vector.broadcast %65 : vector<16x1xf32> to vector<16x32xf32>
    %67 = arith.mulf %62, %66 : vector<16x32xf32>
    %c0_42 = arith.constant 0 : index
    %c0_43 = arith.constant 0 : index
    %68 = vector.load %arg13[%c0_42, %c0_43] : memref<1x32xf32, #tpu.memory_space<vmem>>, vector<1x32xf32>
    %69 = vector.broadcast %68 : vector<1x32xf32> to vector<16x32xf32>
    %70 = arith.mulf %67, %69 : vector<16x32xf32>
    %c0_44 = arith.constant 0 : index
    %c0_45 = arith.constant 0 : index
    %71 = vector.load %arg14[%c0_44, %c0_45] : memref<1x32xf32, #tpu.memory_space<vmem>>, vector<1x32xf32>
    %72 = vector.broadcast %71 : vector<1x32xf32> to vector<16x32xf32>
    %73 = arith.addf %70, %72 : vector<16x32xf32>
    %74 = vector.extract_strided_slice %73 {offsets = [0, 1], sizes = [16, 31], strides = [1, 1]} : vector<16x32xf32> to vector<16x31xf32>
    %75 = vector.extract_strided_slice %73 {offsets = [0, 0], sizes = [16, 1], strides = [1, 1]} : vector<16x32xf32> to vector<16x1xf32>
    %76 = tpu.concatenate %74, %75 in 1 : vector<16x31xf32>, vector<16x1xf32> -> vector<16x32xf32>
    %77 = vector.extract_strided_slice %73 {offsets = [0, 2], sizes = [16, 30], strides = [1, 1]} : vector<16x32xf32> to vector<16x30xf32>
    %78 = vector.extract_strided_slice %73 {offsets = [0, 0], sizes = [16, 2], strides = [1, 1]} : vector<16x32xf32> to vector<16x2xf32>
    %79 = tpu.concatenate %77, %78 in 1 : vector<16x30xf32>, vector<16x2xf32> -> vector<16x32xf32>
    %80 = vector.extract_strided_slice %73 {offsets = [0, 3], sizes = [16, 29], strides = [1, 1]} : vector<16x32xf32> to vector<16x29xf32>
    %81 = vector.extract_strided_slice %73 {offsets = [0, 0], sizes = [16, 3], strides = [1, 1]} : vector<16x32xf32> to vector<16x3xf32>
    %82 = tpu.concatenate %80, %81 in 1 : vector<16x29xf32>, vector<16x3xf32> -> vector<16x32xf32>
    %83 = tpu.concatenate %73, %76, %79, %82 in 0 : vector<16x32xf32>, vector<16x32xf32>, vector<16x32xf32>, vector<16x32xf32> -> vector<64x32xf32>
    %c0_46 = arith.constant 0 : index
    %c0_47 = arith.constant 0 : index
    %84 = vector.load %arg15[%c0_46, %c0_47] : memref<96x64xf32, #tpu.memory_space<vmem>>, vector<96x64xf32>
    %cst_48 = arith.constant dense<0.000000e+00> : vector<96x32xf32>
    %85 = tpu.matmul %84, %83, %cst_48 {dimension_numbers = #tpu.dot_dimension_numbers<[1], [0], [0], [1], [0, 0, 1, 1], [], []>} : vector<96x64xf32>, vector<64x32xf32>, vector<96x32xf32> -> vector<96x32xf32>
    %c0_49 = arith.constant 0 : index
    %c0_50 = arith.constant 0 : index
    %86 = vector.load %arg16[%c0_49, %c0_50] : memref<96x32xf32, #tpu.memory_space<vmem>>, vector<96x32xf32>
    %87 = arith.addf %85, %86 : vector<96x32xf32>
    %cst_51 = arith.constant 0.000000e+00 : f32
    %88 = vector.broadcast %cst_51 : f32 to vector<96x32xf32>
    %89 = arith.maximumf %87, %88 : vector<96x32xf32>
    %cst_52 = arith.constant dense<0xFF800000> : vector<96xf32>
    %90 = vector.multi_reduction <maximumf>, %89, %cst_52 [1] : vector<96x32xf32> to vector<96xf32>
    %91 = vector.shape_cast %90 : vector<96xf32> to vector<96x1xf32>
    %c0_53 = arith.constant 0 : index
    %c0_54 = arith.constant 0 : index
    %92 = vector.load %arg18[%c0_53, %c0_54] : memref<2x96xf32, #tpu.memory_space<vmem>>, vector<2x96xf32>
    %c0_55 = arith.constant 0 : index
    %c0_56 = arith.constant 0 : index
    %93 = vector.load %arg17[%c0_55, %c0_56] : memref<96x2xf32, #tpu.memory_space<vmem>>, vector<96x2xf32>
    %94 = vector.broadcast %91 : vector<96x1xf32> to vector<96x2xf32>
    %95 = arith.mulf %94, %93 : vector<96x2xf32>
    %cst_57 = arith.constant dense<0.000000e+00> : vector<2x2xf32>
    %96 = tpu.matmul %92, %95, %cst_57 {dimension_numbers = #tpu.dot_dimension_numbers<[1], [0], [0], [1], [0, 0, 1, 1], [], []>} : vector<2x96xf32>, vector<96x2xf32>, vector<2x2xf32> -> vector<2x2xf32>
    %c0_58 = arith.constant 0 : index
    %c0_59 = arith.constant 0 : index
    %97 = vector.load %arg19[%c0_58, %c0_59] : memref<1x2xf32, #tpu.memory_space<vmem>>, vector<1x2xf32>
    %98 = vector.broadcast %97 : vector<1x2xf32> to vector<2x2xf32>
    %99 = arith.addf %96, %98 : vector<2x2xf32>
    %cst_60 = arith.constant dense<0xFF800000> : vector<2xf32>
    %100 = vector.multi_reduction <maximumf>, %99, %cst_60 [1] : vector<2x2xf32> to vector<2xf32>
    %101 = vector.shape_cast %100 : vector<2xf32> to vector<2x1xf32>
    %102 = vector.broadcast %101 : vector<2x1xf32> to vector<2x2xf32>
    %103 = arith.subf %99, %102 : vector<2x2xf32>
    %104 = math.exp %103 : vector<2x2xf32>
    %cst_61 = arith.constant dense<0.000000e+00> : vector<2xf32>
    %105 = vector.multi_reduction <add>, %104, %cst_61 [1] : vector<2x2xf32> to vector<2xf32>
    %106 = vector.shape_cast %105 : vector<2xf32> to vector<2x1xf32>
    %107 = vector.broadcast %106 : vector<2x1xf32> to vector<2x2xf32>
    %108 = arith.divf %104, %107 : vector<2x2xf32>
    %c0_62 = arith.constant 0 : index
    %c0_63 = arith.constant 0 : index
    %109 = vector.load %arg20[%c0_62, %c0_63] : memref<2x2xf32, #tpu.memory_space<vmem>>, vector<2x2xf32>
    tpu.vector_store %arg20[%c0_62, %c0_63], %108 {strides = array<i32>} : memref<2x2xf32, #tpu.memory_space<vmem>>, vector<2x2xf32>,
    return
  }
}

</mosaic_0001>

<llo_original>
// kernel: mult_att_cnn_forward.1
$region0: #{mult_att_cnn_forward.1}
  #allocation0 [shape = 'u32[]', space=smem, size = 0x4, offset = 0x4, fixed_abs, tag = 'smem constant byte address 0x4 - core index']
  #allocation1 [shape = 'u32[72,128]{1,0:T(1,128)}', space=vmem, size = 0x9000, scoped, tag = 'internal scratch']
  %s0 = inlined_call_operand.vmem [shape: f32[16,32], index: 0, kind: input, shape index: {}]
  %s1 = inlined_call_operand.vmem [shape: f32[32,48], index: 1, kind: input, shape index: {}]
  %s2 = inlined_call_operand.vmem [shape: f32[32,48], index: 2, kind: input, shape index: {}]
  %s3 = inlined_call_operand.vmem [shape: f32[1,48], index: 3, kind: input, shape index: {}]
  %s4 = inlined_call_operand.vmem [shape: f32[1,48], index: 4, kind: input, shape index: {}]
  %s5 = inlined_call_operand.vmem [shape: f32[32,16], index: 5, kind: input, shape index: {}]
  %s6 = inlined_call_operand.vmem [shape: f32[32,16], index: 6, kind: input, shape index: {}]
  %s7 = inlined_call_operand.vmem [shape: f32[32,32], index: 7, kind: input, shape index: {}]
  %s8 = inlined_call_operand.vmem [shape: f32[16,32], index: 8, kind: input, shape index: {}]
  %s9 = inlined_call_operand.vmem [shape: f32[16,32], index: 9, kind: input, shape index: {}]
  %s10 = inlined_call_operand.vmem [shape: f32[16,32], index: 10, kind: input, shape index: {}]
  %s11 = inlined_call_operand.vmem [shape: f32[16,32], index: 11, kind: input, shape index: {}]
  %s12 = inlined_call_operand.vmem [shape: f32[1,32], index: 12, kind: input, shape index: {}]
  %s13 = inlined_call_operand.vmem [shape: f32[1,32], index: 13, kind: input, shape index: {}]
  %s14 = inlined_call_operand.vmem [shape: f32[1,32], index: 14, kind: input, shape index: {}]
  %s15 = inlined_call_operand.vmem [shape: f32[96,64], index: 15, kind: input, shape index: {}]
  %s16 = inlined_call_operand.vmem [shape: f32[96,32], index: 16, kind: input, shape index: {}]
  %s17 = inlined_call_operand.vmem [shape: f32[96,2], index: 17, kind: input, shape index: {}]
  %s18 = inlined_call_operand.vmem [shape: f32[2,96], index: 18, kind: input, shape index: {}]
  %s19 = inlined_call_operand.vmem [shape: f32[1,2], index: 19, kind: input, shape index: {}]
  %s20 = inlined_call_operand.hbm [shape: f32[2,2], index: 20, kind: output, shape index: {}]
  %s21 = sld [smem:[#allocation0]]
  $region90: #{mult_att_cnn_forward.1} parent=0
    _
  %s23 = ssub.s32 1, %s21
  %s24 = scalar_select 0, %s23, %s21
  $region1: #{mult_att_cnn_forward.1} parent=0
    #allocation2 [shape = 'u8[1024]{0}', space=vmem, size = 0x400, scoped, tag = 'output window, operand 0, single buffered']
    #allocation3 [shape = 's32[1]{0}', space=sflag, size = 0x4, scoped, tag = 'scoped memory for mult_att_cnn_forward.1']
    %25 = vsyncpa [#allocation3], 0
    // Predicated region
    $region2: #{mult_att_cnn_forward.1} parent=1 // pred_check
      _
    $region3: #{mult_att_cnn_forward.1} parent=1 // pred_check_branch
      %27 = sbr.rel (0) target = $region5
    $region4: #{mult_att_cnn_forward.1} parent=1 // pred_region
      _
    $region5: #{mult_att_cnn_forward.1} parent=1 // pred_fallthru
      _
    // Predicated region
    $region6: #{mult_att_cnn_forward.1} parent=1 // pred_check
      _
    $region7: #{mult_att_cnn_forward.1} parent=1 // pred_check_branch
      %29 = sbr.rel (0) target = $region9
    $region8: #{mult_att_cnn_forward.1} parent=1 // pred_region
      _
    $region9: #{mult_att_cnn_forward.1} parent=1 // pred_fallthru
      _
    // Predicated region
    $region10: #{mult_att_cnn_forward.1} parent=1 // pred_check
      _
    $region11: #{mult_att_cnn_forward.1} parent=1 // pred_check_branch
      %31 = sbr.rel (0) target = $region13
    $region12: #{mult_att_cnn_forward.1} parent=1 // pred_region
      _
    $region13: #{mult_att_cnn_forward.1} parent=1 // pred_fallthru
      _
    // Predicated region
    $region14: #{mult_att_cnn_forward.1} parent=1 // pred_check
      _
    $region15: #{mult_att_cnn_forward.1} parent=1 // pred_check_branch
      %33 = sbr.rel (0) target = $region17
    $region16: #{mult_att_cnn_forward.1} parent=1 // pred_region
      _
    $region17: #{mult_att_cnn_forward.1} parent=1 // pred_fallthru
      _
    // Predicated region
    $region18: #{mult_att_cnn_forward.1} parent=1 // pred_check
      _
    $region19: #{mult_att_cnn_forward.1} parent=1 // pred_check_branch
      %35 = sbr.rel (0) target = $region21
    $region20: #{mult_att_cnn_forward.1} parent=1 // pred_region
      _
    $region21: #{mult_att_cnn_forward.1} parent=1 // pred_fallthru
      _
    // Predicated region
    $region22: #{mult_att_cnn_forward.1} parent=1 // pred_check
      _
    $region23: #{mult_att_cnn_forward.1} parent=1 // pred_check_branch
      %37 = sbr.rel (0) target = $region25
    $region24: #{mult_att_cnn_forward.1} parent=1 // pred_region
      _
    $region25: #{mult_att_cnn_forward.1} parent=1 // pred_fallthru
      _
    // Predicated region
    $region26: #{mult_att_cnn_forward.1} parent=1 // pred_check
      _
    $region27: #{mult_att_cnn_forward.1} parent=1 // pred_check_branch
      %39 = sbr.rel (0) target = $region29
    $region28: #{mult_att_cnn_forward.1} parent=1 // pred_region
      _
    $region29: #{mult_att_cnn_forward.1} parent=1 // pred_fallthru
      _
    // Predicated region
    $region30: #{mult_att_cnn_forward.1} parent=1 // pred_check
      _
    $region31: #{mult_att_cnn_forward.1} parent=1 // pred_check_branch
      %41 = sbr.rel (0) target = $region33
    $region32: #{mult_att_cnn_forward.1} parent=1 // pred_region
      _
    $region33: #{mult_att_cnn_forward.1} parent=1 // pred_fallthru
      _
    // Predicated region
    $region34: #{mult_att_cnn_forward.1} parent=1 // pred_check
      _
    $region35: #{mult_att_cnn_forward.1} parent=1 // pred_check_branch
      %43 = sbr.rel (0) target = $region37
    $region36: #{mult_att_cnn_forward.1} parent=1 // pred_region
      _
    $region37: #{mult_att_cnn_forward.1} parent=1 // pred_fallthru
      _
    // Predicated region
    $region38: #{mult_att_cnn_forward.1} parent=1 // pred_check
      _
    $region39: #{mult_att_cnn_forward.1} parent=1 // pred_check_branch
      %45 = sbr.rel (0) target = $region41
    $region40: #{mult_att_cnn_forward.1} parent=1 // pred_region
      _
    $region41: #{mult_att_cnn_forward.1} parent=1 // pred_fallthru
      _
    // Predicated region
    $region42: #{mult_att_cnn_forward.1} parent=1 // pred_check
      _
    $region43: #{mult_att_cnn_forward.1} parent=1 // pred_check_branch
      %47 = sbr.rel (0) target = $region45
    $region44: #{mult_att_cnn_forward.1} parent=1 // pred_region
      _
    $region45: #{mult_att_cnn_forward.1} parent=1 // pred_fallthru
      _
    // Predicated region
    $region46: #{mult_att_cnn_forward.1} parent=1 // pred_check
      _
    $region47: #{mult_att_cnn_forward.1} parent=1 // pred_check_branch
      %49 = sbr.rel (0) target = $region49
    $region48: #{mult_att_cnn_forward.1} parent=1 // pred_region
      _
    $region49: #{mult_att_cnn_forward.1} parent=1 // pred_fallthru
      _
    // Predicated region
    $region50: #{mult_att_cnn_forward.1} parent=1 // pred_check
      _
    $region51: #{mult_att_cnn_forward.1} parent=1 // pred_check_branch
      %51 = sbr.rel (0) target = $region53
    $region52: #{mult_att_cnn_forward.1} parent=1 // pred_region
      _
    $region53: #{mult_att_cnn_forward.1} parent=1 // pred_fallthru
      _
    // Predicated region
    $region54: #{mult_att_cnn_forward.1} parent=1 // pred_check
      _
    $region55: #{mult_att_cnn_forward.1} parent=1 // pred_check_branch
      %53 = sbr.rel (0) target = $region57
    $region56: #{mult_att_cnn_forward.1} parent=1 // pred_region
      _
    $region57: #{mult_att_cnn_forward.1} parent=1 // pred_fallthru
      _
    // Predicated region
    $region58: #{mult_att_cnn_forward.1} parent=1 // pred_check
      _
    $region59: #{mult_att_cnn_forward.1} parent=1 // pred_check_branch
      %55 = sbr.rel (0) target = $region61
    $region60: #{mult_att_cnn_forward.1} parent=1 // pred_region
      _
    $region61: #{mult_att_cnn_forward.1} parent=1 // pred_fallthru
      _
    // Predicated region
    $region62: #{mult_att_cnn_forward.1} parent=1 // pred_check
      _
    $region63: #{mult_att_cnn_forward.1} parent=1 // pred_check_branch
      %57 = sbr.rel (0) target = $region65
    $region64: #{mult_att_cnn_forward.1} parent=1 // pred_region
      _
    $region65: #{mult_att_cnn_forward.1} parent=1 // pred_fallthru
      _
    // Predicated region
    $region66: #{mult_att_cnn_forward.1} parent=1 // pred_check
      _
    $region67: #{mult_att_cnn_forward.1} parent=1 // pred_check_branch
      %59 = sbr.rel (0) target = $region69
    $region68: #{mult_att_cnn_forward.1} parent=1 // pred_region
      _
    $region69: #{mult_att_cnn_forward.1} parent=1 // pred_fallthru
      _
    // Predicated region
    $region70: #{mult_att_cnn_forward.1} parent=1 // pred_check
      _
    $region71: #{mult_att_cnn_forward.1} parent=1 // pred_check_branch
      %61 = sbr.rel (0) target = $region73
    $region72: #{mult_att_cnn_forward.1} parent=1 // pred_region
      _
    $region73: #{mult_att_cnn_forward.1} parent=1 // pred_fallthru
      _
    // Predicated region
    $region74: #{mult_att_cnn_forward.1} parent=1 // pred_check
      _
    $region75: #{mult_att_cnn_forward.1} parent=1 // pred_check_branch
      %63 = sbr.rel (0) target = $region77
    $region76: #{mult_att_cnn_forward.1} parent=1 // pred_region
      _
    $region77: #{mult_att_cnn_forward.1} parent=1 // pred_fallthru
      _
    // Predicated region
    $region78: #{mult_att_cnn_forward.1} parent=1 // pred_check
      _
    $region79: #{mult_att_cnn_forward.1} parent=1 // pred_check_branch
      %65 = sbr.rel (0) target = $region81
    $region80: #{mult_att_cnn_forward.1} parent=1 // pred_region
      _
    $region81: #{mult_att_cnn_forward.1} parent=1 // pred_fallthru
      _
    %v66 = vld [vmem:[%s0] sm:$0xff]
    %v67 = vld [vmem:[%s0 + $0x8] sm:$0xff]
    %v68 = vld [vmem:[%s1] sm:$0xff]
    %v69 = vld [vmem:[%s1 + $0x8] sm:$0xff]
    %v70 = vld [vmem:[%s1 + $0x10] sm:$0xff]
    %v71 = vld [vmem:[%s1 + $0x18] sm:$0xff]
    %v72 = vld [vmem:[%s3] sm:$0x1]
    %v74 = vperm.slane %v72, 0
    %vm76 = vcmask 261120
    %v78 = vsel %vm76, %v66, 0
    %v81 = vsel %vm76, %v67, 0
    %83 = vmatpush.msra.mxu0 0.0
    %84 = vmatpush.msra.mxu0 0.0
    %85 = vmatpush.msra.mxu0 0.0
    %86 = vmatpush.msra.mxu0 0.0
    %87 = vmatpush.msra.mxu0 0.0
    %88 = vmatpush.msra.mxu0 0.0
    %89 = vmatpush.msra.mxu0 0.0
    %90 = vmatpush.msra.mxu0 0.0
    %91 = vmatpush.msra.mxu0 0.0
    %92 = vmatpush.msra.mxu0 0.0
    %93 = vmatpush.msra.mxu0 0.0
    %94 = vmatpush.msra.mxu0 0.0
    %95 = vmatpush.msra.mxu0 %v71
    %96 = vmatpush.msra.mxu0 %v70
    %97 = vmatpush.msra.mxu0 %v69
    %98 = vmatpush.msra.mxu0 %v68
    %99 = vmatmul.f32.gmra.mxu0 %v78
    %v100 = vpop.f32.mrf.mxu0
    %v101 = vadd.f32 %v74, %v100
    %102 = vmatmul.f32.gmra.mxu0 %v81
    %v103 = vpop.f32.mrf.mxu0
    %v104 = vadd.f32 %v74, %v103
    %105 = vdwg.mxu0
    %v106 = vld [vmem:[%s2] sm:$0xff]
    %v107 = vld [vmem:[%s2 + $0x8] sm:$0xff]
    %v108 = vld [vmem:[%s2 + $0x10] sm:$0xff]
    %v109 = vld [vmem:[%s2 + $0x18] sm:$0xff]
    %v110 = vld [vmem:[%s4] sm:$0x1]
    %v112 = vperm.slane %v110, 0
    %114 = vmatpush.msra.mxu0 0.0
    %115 = vmatpush.msra.mxu0 0.0
    %116 = vmatpush.msra.mxu0 0.0
    %117 = vmatpush.msra.mxu0 0.0
    %118 = vmatpush.msra.mxu0 0.0
    %119 = vmatpush.msra.mxu0 0.0
    %120 = vmatpush.msra.mxu0 0.0
    %121 = vmatpush.msra.mxu0 0.0
    %122 = vmatpush.msra.mxu0 0.0
    %123 = vmatpush.msra.mxu0 0.0
    %124 = vmatpush.msra.mxu0 0.0
    %125 = vmatpush.msra.mxu0 0.0
    %126 = vmatpush.msra.mxu0 %v109
    %127 = vmatpush.msra.mxu0 %v108
    %128 = vmatpush.msra.mxu0 %v107
    %129 = vmatpush.msra.mxu0 %v106
    %130 = vmatmul.f32.gmra.mxu0 %v78
    %v131 = vpop.f32.mrf.mxu0
    %v132 = vadd.f32 %v112, %v131
    %133 = vmatmul.f32.gmra.mxu0 %v81
    %v134 = vpop.f32.mrf.mxu0
    %v135 = vadd.f32 %v112, %v134
    %136 = vdwg.mxu0
    %v137 = vld [vmem:[%s5] sm:$0xff]
    %v138 = vld [vmem:[%s5 + $0x8] sm:$0xff]
    %v139 = vld [vmem:[%s5 + $0x10] sm:$0xff]
    %v140 = vld [vmem:[%s5 + $0x18] sm:$0xff]
    %v141 = vld [vmem:[%s6] sm:$0xff]
    %v142 = vld [vmem:[%s6 + $0x8] sm:$0xff]
    %v143 = vld [vmem:[%s6 + $0x10] sm:$0xff]
    %v144 = vld [vmem:[%s6 + $0x18] sm:$0xff]
    %vm145 = vcmask 130048
    %v147 = vsel %vm145, %v141, 0
    %v150 = vsel %vm145, %v142, 0
    %v153 = vsel %vm145, %v143, 0
    %v156 = vsel %vm145, %v144, 0
    %158 = vmatpush.msra.mxu0 0.0
    %159 = vmatpush.msra.mxu0 0.0
    %160 = vmatpush.msra.mxu0 0.0
    %161 = vmatpush.msra.mxu0 0.0
    %162 = vmatpush.msra.mxu0 0.0
    %163 = vmatpush.msra.mxu0 0.0
    %164 = vmatpush.msra.mxu0 0.0
    %165 = vmatpush.msra.mxu0 0.0
    %166 = vmatpush.msra.mxu0 0.0
    %167 = vmatpush.msra.mxu0 0.0
    %168 = vmatpush.msra.mxu0 0.0
    %169 = vmatpush.msra.mxu0 0.0
    %170 = vmatpush.msra.mxu0 0.0
    %171 = vmatpush.msra.mxu0 0.0
    %172 = vmatpush.msra.mxu0 %v135
    %173 = vmatpush.msra.mxu0 %v132
    %174 = vmatmul.f32.gmra.mxu0 %v147
    %v175 = vpop.f32.mrf.mxu0
    %v176 = vadd.f32 0.0, %v175
    %177 = vmatmul.f32.gmra.mxu0 %v150
    %v178 = vpop.f32.mrf.mxu0
    %v179 = vadd.f32 0.0, %v178
    %180 = vmatmul.f32.gmra.mxu0 %v153
    %v181 = vpop.f32.mrf.mxu0
    %v182 = vadd.f32 0.0, %v181
    %183 = vmatmul.f32.gmra.mxu0 %v156
    %v184 = vpop.f32.mrf.mxu0
    %v185 = vadd.f32 0.0, %v184
    %186 = vdwg.mxu0
    %v188 = vsel %vm145, %v137, 0
    %v191 = vsel %vm145, %v138, 0
    %v194 = vsel %vm145, %v139, 0
    %v197 = vsel %vm145, %v140, 0
    %199 = vmatpush.msra.mxu0 0.0
    %200 = vmatpush.msra.mxu0 0.0
    %201 = vmatpush.msra.mxu0 0.0
    %202 = vmatpush.msra.mxu0 0.0
    %203 = vmatpush.msra.mxu0 0.0
    %204 = vmatpush.msra.mxu0 0.0
    %205 = vmatpush.msra.mxu0 0.0
    %206 = vmatpush.msra.mxu0 0.0
    %207 = vmatpush.msra.mxu0 0.0
    %208 = vmatpush.msra.mxu0 0.0
    %209 = vmatpush.msra.mxu0 0.0
    %210 = vmatpush.msra.mxu0 0.0
    %211 = vmatpush.msra.mxu0 0.0
    %212 = vmatpush.msra.mxu0 0.0
    %213 = vmatpush.msra.mxu0 %v104
    %214 = vmatpush.msra.mxu0 %v101
    %215 = vmatmul.f32.gmra.mxu0 %v188
    %v216 = vpop.f32.mrf.mxu0
    %v217 = vadd.f32 %v176, %v216
    %218 = vmatmul.f32.gmra.mxu0 %v191
    %v219 = vpop.f32.mrf.mxu0
    %v220 = vadd.f32 %v179, %v219
    %221 = vmatmul.f32.gmra.mxu0 %v194
    %v222 = vpop.f32.mrf.mxu0
    %v223 = vadd.f32 %v182, %v222
    %224 = vmatmul.f32.gmra.mxu0 %v197
    %v225 = vpop.f32.mrf.mxu0
    %v226 = vadd.f32 %v185, %v225
    %227 = vdwg.mxu0
    %232 = vrot.lane.b32.xlu0 %v217, 112
    %v233 = vpop.permute.xlu0 %232
    %234 = vrot.lane.b32.xlu0 %v220, 112
    %v235 = vpop.permute.xlu0 %234
    %236 = vrot.lane.b32.xlu0 %v223, 112
    %v237 = vpop.permute.xlu0 %236
    %238 = vrot.lane.b32.xlu0 %v226, 112
    %v239 = vpop.permute.xlu0 %238
    %v240 = vsel %vm145, %v217, 0
    %v242 = vsel %vm145, %v220, 0
    %v244 = vsel %vm145, %v223, 0
    %v246 = vsel %vm145, %v226, 0
    %v248 = vsel %vm145, %v233, 0
    %v250 = vsel %vm145, %v235, 0
    %v252 = vsel %vm145, %v237, 0
    %v254 = vsel %vm145, %v239, 0
    %256 = vmatpush.xpose.msra.mxu0 0.0
    %257 = vmatpush.xpose.msra.mxu0 0.0
    %258 = vmatpush.xpose.msra.mxu0 0.0
    %259 = vmatpush.xpose.msra.mxu0 0.0
    %260 = vmatpush.xpose.msra.mxu0 0.0
    %261 = vmatpush.xpose.msra.mxu0 0.0
    %262 = vmatpush.xpose.msra.mxu0 0.0
    %263 = vmatpush.xpose.msra.mxu0 0.0
    %264 = vmatpush.xpose.msra.mxu0 0.0
    %265 = vmatpush.xpose.msra.mxu0 0.0
    %266 = vmatpush.xpose.msra.mxu0 0.0
    %267 = vmatpush.xpose.msra.mxu0 0.0
    %268 = vmatpush.xpose.msra.mxu0 %v254
    %269 = vmatpush.xpose.msra.mxu0 %v252
    %270 = vmatpush.xpose.msra.mxu0 %v250
    %271 = vmatpush.xpose.msra.mxu0 %v248
    %272 = vmatmul.f32.gmra.mxu0 %v240
    %v273 = vpop.f32.mrf.mxu0
    %v274 = vadd.f32 0.0, %v273
    %275 = vmatmul.f32.gmra.mxu0 %v242
    %v276 = vpop.f32.mrf.mxu0
    %v277 = vadd.f32 0.0, %v276
    %278 = vmatmul.f32.gmra.mxu0 %v244
    %v279 = vpop.f32.mrf.mxu0
    %v280 = vadd.f32 0.0, %v279
    %281 = vmatmul.f32.gmra.mxu0 %v246
    %v282 = vpop.f32.mrf.mxu0
    %v283 = vadd.f32 0.0, %v282
    %284 = vdwg.mxu0
    %v285 = vmul.f32 %v274, 0.35355338
    %v286 = vmul.f32 %v277, 0.35355338
    %v287 = vmul.f32 %v280, 0.35355338
    %v288 = vmul.f32 %v283, 0.35355338
    %v289 = vld [vmem:[%s7] sm:$0xff]
    %v290 = vld [vmem:[%s7 + $0x8] sm:$0xff]
    %v291 = vld [vmem:[%s7 + $0x10] sm:$0xff]
    %v292 = vld [vmem:[%s7 + $0x18] sm:$0xff]
    %v293 = vadd.f32 %v285, %v289
    %v294 = vadd.f32 %v286, %v290
    %v295 = vadd.f32 %v287, %v291
    %v296 = vadd.f32 %v288, %v292
    %v297 = vsel %vm76, %v293, -inf
    %298 = vmax.xlane.f32.xlu0 %v297
    %v299 = vpop.xlane.xlu0 %298
    %v300 = vsel %vm76, %v294, -inf
    %301 = vmax.xlane.f32.xlu0 %v300
    %v302 = vpop.xlane.xlu0 %301
    %v303 = vsel %vm76, %v295, -inf
    %304 = vmax.xlane.f32.xlu0 %v303
    %v305 = vpop.xlane.xlu0 %304
    %v306 = vsel %vm76, %v296, -inf
    %307 = vmax.xlane.f32.xlu0 %v306
    %v308 = vpop.xlane.xlu0 %307
    %v309 = vsub.f32 %v293, %v299
    %v310 = vsub.f32 %v294, %v302
    %v311 = vsub.f32 %v295, %v305
    %v312 = vsub.f32 %v296, %v308
    %v313 = vmul.f32 %v309, 1.442695
    %v314 = vpow.pop %v313
    %v315 = vmul.f32 %v310, 1.442695
    %v316 = vpow.pop %v315
    %v317 = vmul.f32 %v311, 1.442695
    %v318 = vpow.pop %v317
    %v319 = vmul.f32 %v312, 1.442695
    %v320 = vpow.pop %v319
    %v321 = vsel %vm76, %v314, 0.0
    %322 = vadd.xlane.f32.xlu0 %v321
    %v323 = vpop.xlane.xlu0 %322
    %v324 = vsel %vm76, %v316, 0.0
    %325 = vadd.xlane.f32.xlu0 %v324
    %v326 = vpop.xlane.xlu0 %325
    %v327 = vsel %vm76, %v318, 0.0
    %328 = vadd.xlane.f32.xlu0 %v327
    %v329 = vpop.xlane.xlu0 %328
    %v330 = vsel %vm76, %v320, 0.0
    %331 = vadd.xlane.f32.xlu0 %v330
    %v332 = vpop.xlane.xlu0 %331
    %v333 = vrcp.pop %v323
    %v334 = vrcp.pop %v326
    %v335 = vrcp.pop %v329
    %v336 = vrcp.pop %v332
    %v337 = vmul.f32 %v314, %v333
    %v338 = vmul.f32 %v316, %v334
    %v339 = vmul.f32 %v318, %v335
    %v340 = vmul.f32 %v320, %v336
    %341 = vrot.lane.b32.xlu0 %v217, 96
    %v342 = vpop.permute.xlu0 %341
    %343 = vrot.lane.b32.xlu0 %v220, 96
    %v344 = vpop.permute.xlu0 %343
    %345 = vrot.lane.b32.xlu0 %v223, 96
    %v346 = vpop.permute.xlu0 %345
    %347 = vrot.lane.b32.xlu0 %v226, 96
    %v348 = vpop.permute.xlu0 %347
    %v354 = vsel %vm76, %v337, 0
    %v357 = vsel %vm76, %v338, 0
    %v360 = vsel %vm76, %v339, 0
    %v363 = vsel %vm76, %v340, 0
    %365 = vmatpush.msra.mxu0 0.0
    %366 = vmatpush.msra.mxu0 0.0
    %367 = vmatpush.msra.mxu0 0.0
    %368 = vmatpush.msra.mxu0 0.0
    %369 = vmatpush.msra.mxu0 0.0
    %370 = vmatpush.msra.mxu0 0.0
    %371 = vmatpush.msra.mxu0 0.0
    %372 = vmatpush.msra.mxu0 0.0
    %373 = vmatpush.msra.mxu0 0.0
    %374 = vmatpush.msra.mxu0 0.0
    %375 = vmatpush.msra.mxu0 0.0
    %376 = vmatpush.msra.mxu0 0.0
    %377 = vmatpush.msra.mxu0 %v348
    %378 = vmatpush.msra.mxu0 %v346
    %379 = vmatpush.msra.mxu0 %v344
    %380 = vmatpush.msra.mxu0 %v342
    %381 = vmatmul.f32.gmra.mxu0 %v354
    %v382 = vpop.f32.mrf.mxu0
    %v383 = vadd.f32 0.0, %v382
    %384 = vmatmul.f32.gmra.mxu0 %v357
    %v385 = vpop.f32.mrf.mxu0
    %v386 = vadd.f32 0.0, %v385
    %387 = vmatmul.f32.gmra.mxu0 %v360
    %v388 = vpop.f32.mrf.mxu0
    %v389 = vadd.f32 0.0, %v388
    %390 = vmatmul.f32.gmra.mxu0 %v363
    %v391 = vpop.f32.mrf.mxu0
    %v392 = vadd.f32 0.0, %v391
    %393 = vdwg.mxu0
    %v394 = vld [vmem:[%s8] sm:$0xff]
    %v395 = vld [vmem:[%s8 + $0x8] sm:$0xff]
    %v397 = vsel %vm76, %v394, 0
    %v400 = vsel %vm76, %v395, 0
    %402 = vmatpush.msra.mxu0 0.0
    %403 = vmatpush.msra.mxu0 0.0
    %404 = vmatpush.msra.mxu0 0.0
    %405 = vmatpush.msra.mxu0 0.0
    %406 = vmatpush.msra.mxu0 0.0
    %407 = vmatpush.msra.mxu0 0.0
    %408 = vmatpush.msra.mxu0 0.0
    %409 = vmatpush.msra.mxu0 0.0
    %410 = vmatpush.msra.mxu0 0.0
    %411 = vmatpush.msra.mxu0 0.0
    %412 = vmatpush.msra.mxu0 0.0
    %413 = vmatpush.msra.mxu0 0.0
    %414 = vmatpush.msra.mxu0 %v392
    %415 = vmatpush.msra.mxu0 %v389
    %416 = vmatpush.msra.mxu0 %v386
    %417 = vmatpush.msra.mxu0 %v383
    %418 = vmatmul.f32.gmra.mxu0 %v397
    %v419 = vpop.f32.mrf.mxu0
    %v420 = vadd.f32 0.0, %v419
    %421 = vmatmul.f32.gmra.mxu0 %v400
    %v422 = vpop.f32.mrf.mxu0
    %v423 = vadd.f32 0.0, %v422
    %424 = vdwg.mxu0
    %v425 = vld [vmem:[%s10] sm:$0xff]
    %v426 = vld [vmem:[%s10 + $0x8] sm:$0xff]
    %v427 = vld [vmem:[%s9] sm:$0xff]
    %v428 = vld [vmem:[%s9 + $0x8] sm:$0xff]
    %v430 = vsel %vm76, %v427, 0
    %v433 = vsel %vm76, %v428, 0
    %435 = vmatpush.msra.mxu0 0.0
    %436 = vmatpush.msra.mxu0 0.0
    %437 = vmatpush.msra.mxu0 0.0
    %438 = vmatpush.msra.mxu0 0.0
    %439 = vmatpush.msra.mxu0 0.0
    %440 = vmatpush.msra.mxu0 0.0
    %441 = vmatpush.msra.mxu0 0.0
    %442 = vmatpush.msra.mxu0 0.0
    %443 = vmatpush.msra.mxu0 0.0
    %444 = vmatpush.msra.mxu0 0.0
    %445 = vmatpush.msra.mxu0 0.0
    %446 = vmatpush.msra.mxu0 0.0
    %447 = vmatpush.msra.mxu0 %v392
    %448 = vmatpush.msra.mxu0 %v389
    %449 = vmatpush.msra.mxu0 %v386
    %450 = vmatpush.msra.mxu0 %v383
    %451 = vmatmul.f32.gmra.mxu0 %v430
    %v452 = vpop.f32.mrf.mxu0
    %v453 = vadd.f32 0.0, %v452
    %454 = vmatmul.f32.gmra.mxu0 %v433
    %v455 = vpop.f32.mrf.mxu0
    %v456 = vadd.f32 0.0, %v455
    %457 = vdwg.mxu0
    %v458 = vld [vmem:[%s11] sm:$0xff]
    %v459 = vld [vmem:[%s11 + $0x8] sm:$0xff]
    %v461 = vsel %vm145, %v453, 0
    %v464 = vsel %vm145, %v456, 0
    %466 = vmatpush.msra.mxu0 0.0
    %467 = vmatpush.msra.mxu0 0.0
    %468 = vmatpush.msra.mxu0 0.0
    %469 = vmatpush.msra.mxu0 0.0
    %470 = vmatpush.msra.mxu0 0.0
    %471 = vmatpush.msra.mxu0 0.0
    %472 = vmatpush.msra.mxu0 0.0
    %473 = vmatpush.msra.mxu0 0.0
    %474 = vmatpush.msra.mxu0 0.0
    %475 = vmatpush.msra.mxu0 0.0
    %476 = vmatpush.msra.mxu0 0.0
    %477 = vmatpush.msra.mxu0 0.0
    %478 = vmatpush.msra.mxu0 0.0
    %479 = vmatpush.msra.mxu0 0.0
    %480 = vmatpush.msra.mxu0 %v459
    %481 = vmatpush.msra.mxu0 %v458
    %482 = vmatmul.f32.gmra.mxu0 %v461
    %v483 = vpop.f32.mrf.mxu0
    %v484 = vadd.f32 0.0, %v483
    %485 = vmatmul.f32.gmra.mxu0 %v464
    %v486 = vpop.f32.mrf.mxu0
    %v487 = vadd.f32 0.0, %v486
    %488 = vdwg.mxu0
    %v490 = vsel %vm145, %v420, 0
    %v493 = vsel %vm145, %v423, 0
    %495 = vmatpush.msra.mxu0 0.0
    %496 = vmatpush.msra.mxu0 0.0
    %497 = vmatpush.msra.mxu0 0.0
    %498 = vmatpush.msra.mxu0 0.0
    %499 = vmatpush.msra.mxu0 0.0
    %500 = vmatpush.msra.mxu0 0.0
    %501 = vmatpush.msra.mxu0 0.0
    %502 = vmatpush.msra.mxu0 0.0
    %503 = vmatpush.msra.mxu0 0.0
    %504 = vmatpush.msra.mxu0 0.0
    %505 = vmatpush.msra.mxu0 0.0
    %506 = vmatpush.msra.mxu0 0.0
    %507 = vmatpush.msra.mxu0 0.0
    %508 = vmatpush.msra.mxu0 0.0
    %509 = vmatpush.msra.mxu0 %v426
    %510 = vmatpush.msra.mxu0 %v425
    %511 = vmatmul.f32.gmra.mxu0 %v490
    %v512 = vpop.f32.mrf.mxu0
    %v513 = vadd.f32 %v484, %v512
    %514 = vmatmul.f32.gmra.mxu0 %v493
    %v515 = vpop.f32.mrf.mxu0
    %v516 = vadd.f32 %v487, %v515
    %517 = vdwg.mxu0
    %v518 = vld [vmem:[%s12] sm:$0x1]
    %v520 = vperm.slane %v518, 0
    %v522 = vadd.f32 %v513, %v520
    %v523 = vadd.f32 %v516, %v520
    %v524 = vadd.f32 %v66, %v522
    %v525 = vadd.f32 %v67, %v523
    %v526 = vsel %vm76, %v524, 0.0
    %527 = vadd.xlane.f32.xlu0 %v526
    %v528 = vpop.xlane.xlu0 %527
    %v529 = vsel %vm76, %v525, 0.0
    %530 = vadd.xlane.f32.xlu0 %v529
    %v531 = vpop.xlane.xlu0 %530
    %v532 = vrcp.pop 32.0
    %v533 = vmul.f32 32.0, %v532
    %v534 = vsub.f32 1.0, %v533
    %v535 = vmul.f32 %v532, %v534
    %v536 = vadd.f32 %v532, %v535
    %vm537 = vweird.f32 %v532
    %v538 = vsel %vm537, %v532, %v536
    %v539 = vmul.f32 %v528, %v538
    %v540 = vmul.f32 %v531, %v538
    %v541 = vsub.f32 %v524, %v539
    %v542 = vsub.f32 %v525, %v540
    %v543 = vmul.f32 %v541, %v541
    %v544 = vmul.f32 %v542, %v542
    %v545 = vsel %vm76, %v543, 0.0
    %546 = vadd.xlane.f32.xlu0 %v545
    %v547 = vpop.xlane.xlu0 %546
    %v548 = vsel %vm76, %v544, 0.0
    %549 = vadd.xlane.f32.xlu0 %v548
    %v550 = vpop.xlane.xlu0 %549
    %v551 = vmul.f32 %v547, %v538
    %v552 = vmul.f32 %v550, %v538
    %v553 = vadd.f32 %v551, 1e-05
    %v554 = vadd.f32 %v552, 1e-05
    %v555 = vrsqrt.pop %v553
    %v556 = vmul.f32 %v555, %v553
    %v557 = vmul.f32 %v556, %v555
    %v558 = vmul.f32 0.5, %v557
    %v559 = vsub.f32 1.5, %v558
    %v560 = vmul.f32 %v555, %v559
    %vm561 = vweird.f32 %v553
    %vm562 = vweird.f32 %v555
    %vm563 = vmor %vm561, %vm562
    %v564 = vsel %vm563, %v555, %v560
    %v565 = vrsqrt.pop %v554
    %v566 = vmul.f32 %v565, %v554
    %v567 = vmul.f32 %v566, %v565
    %v568 = vmul.f32 0.5, %v567
    %v569 = vsub.f32 1.5, %v568
    %v570 = vmul.f32 %v565, %v569
    %vm571 = vweird.f32 %v554
    %vm572 = vweird.f32 %v565
    %vm573 = vmor %vm571, %vm572
    %v574 = vsel %vm573, %v565, %v570
    %v575 = vmul.f32 %v541, %v564
    %v576 = vmul.f32 %v542, %v574
    %v577 = vld [vmem:[%s13] sm:$0x1]
    %v579 = vperm.slane %v577, 0
    %v581 = vmul.f32 %v575, %v579
    %v582 = vmul.f32 %v576, %v579
    %v583 = vld [vmem:[%s14] sm:$0x1]
    %v585 = vperm.slane %v583, 0
    %v587 = vadd.f32 %v581, %v585
    %v588 = vadd.f32 %v582, %v585
    %591 = vrot.lane.b32.xlu0 %v587, 127
    %v592 = vpop.permute.xlu0 %591
    %593 = vrot.lane.b32.xlu0 %v588, 127
    %v594 = vpop.permute.xlu0 %593
    %597 = vrot.lane.b32.xlu0 %v587, 31
    %v598 = vpop.permute.xlu0 %597
    %599 = vrot.lane.b32.xlu0 %v588, 31
    %v600 = vpop.permute.xlu0 %599
    %vm603 = vcmask 252928
    %v604 = vsel %vm603, %v592, %v598
    %v605 = vsel %vm603, %v594, %v600
    %606 = vrot.lane.b32.xlu0 %v587, 126
    %v607 = vpop.permute.xlu0 %606
    %608 = vrot.lane.b32.xlu0 %v588, 126
    %v609 = vpop.permute.xlu0 %608
    %612 = vrot.lane.b32.xlu0 %v587, 30
    %v613 = vpop.permute.xlu0 %612
    %614 = vrot.lane.b32.xlu0 %v588, 30
    %v615 = vpop.permute.xlu0 %614
    %vm618 = vcmask 244736
    %v619 = vsel %vm618, %v607, %v613
    %v620 = vsel %vm618, %v609, %v615
    %621 = vrot.lane.b32.xlu0 %v587, 125
    %v622 = vpop.permute.xlu0 %621
    %623 = vrot.lane.b32.xlu0 %v588, 125
    %v624 = vpop.permute.xlu0 %623
    %627 = vrot.lane.b32.xlu0 %v587, 29
    %v628 = vpop.permute.xlu0 %627
    %629 = vrot.lane.b32.xlu0 %v588, 29
    %v630 = vpop.permute.xlu0 %629
    %vm633 = vcmask 236544
    %v634 = vsel %vm633, %v622, %v628
    %v635 = vsel %vm633, %v624, %v630
    %v636 = vld [vmem:[%s15] sm:$0xff]
    %v637 = vld [vmem:[%s15 + $0x8] sm:$0xff]
    %v638 = vld [vmem:[%s15 + $0x10] sm:$0xff]
    %v639 = vld [vmem:[%s15 + $0x18] sm:$0xff]
    %v640 = vld [vmem:[%s15 + $0x20] sm:$0xff]
    %v641 = vld [vmem:[%s15 + $0x28] sm:$0xff]
    %v642 = vld [vmem:[%s15 + $0x30] sm:$0xff]
    %v643 = vld [vmem:[%s15 + $0x38] sm:$0xff]
    %v644 = vld [vmem:[%s15 + $0x40] sm:$0xff]
    %v645 = vld [vmem:[%s15 + $0x48] sm:$0xff]
    %v646 = vld [vmem:[%s15 + $0x50] sm:$0xff]
    %v647 = vld [vmem:[%s15 + $0x58] sm:$0xff]
    %v648 = vld [vmem:[%s16] sm:$0xff]
    %v649 = vld [vmem:[%s16 + $0x8] sm:$0xff]
    %v650 = vld [vmem:[%s16 + $0x10] sm:$0xff]
    %v651 = vld [vmem:[%s16 + $0x18] sm:$0xff]
    %v652 = vld [vmem:[%s16 + $0x20] sm:$0xff]
    %v653 = vld [vmem:[%s16 + $0x28] sm:$0xff]
    %v654 = vld [vmem:[%s16 + $0x30] sm:$0xff]
    %v655 = vld [vmem:[%s16 + $0x38] sm:$0xff]
    %v656 = vld [vmem:[%s16 + $0x40] sm:$0xff]
    %v657 = vld [vmem:[%s16 + $0x48] sm:$0xff]
    %v658 = vld [vmem:[%s16 + $0x50] sm:$0xff]
    %v659 = vld [vmem:[%s16 + $0x58] sm:$0xff]
    %vm660 = vcmask 523264
    %v662 = vsel %vm660, %v636, 0
    %v665 = vsel %vm660, %v637, 0
    %v668 = vsel %vm660, %v638, 0
    %v671 = vsel %vm660, %v639, 0
    %v674 = vsel %vm660, %v640, 0
    %v677 = vsel %vm660, %v641, 0
    %v680 = vsel %vm660, %v642, 0
    %v683 = vsel %vm660, %v643, 0
    %v686 = vsel %vm660, %v644, 0
    %v689 = vsel %vm660, %v645, 0
    %v692 = vsel %vm660, %v646, 0
    %v695 = vsel %vm660, %v647, 0
    %697 = vmatpush.msra.mxu0 0.0
    %698 = vmatpush.msra.mxu0 0.0
    %699 = vmatpush.msra.mxu0 0.0
    %700 = vmatpush.msra.mxu0 0.0
    %701 = vmatpush.msra.mxu0 0.0
    %702 = vmatpush.msra.mxu0 0.0
    %703 = vmatpush.msra.mxu0 0.0
    %704 = vmatpush.msra.mxu0 0.0
    %705 = vmatpush.msra.mxu0 %v635
    %706 = vmatpush.msra.mxu0 %v634
    %707 = vmatpush.msra.mxu0 %v620
    %708 = vmatpush.msra.mxu0 %v619
    %709 = vmatpush.msra.mxu0 %v605
    %710 = vmatpush.msra.mxu0 %v604
    %711 = vmatpush.msra.mxu0 %v588
    %712 = vmatpush.msra.mxu0 %v587
    %713 = vmatmul.f32.gmra.mxu0 %v662
    %v714 = vpop.f32.mrf.mxu0
    %v715 = vadd.f32 %v648, %v714
    %716 = vmatmul.f32.gmra.mxu0 %v665
    %v717 = vpop.f32.mrf.mxu0
    %v718 = vadd.f32 %v649, %v717
    %719 = vmatmul.f32.gmra.mxu0 %v668
    %v720 = vpop.f32.mrf.mxu0
    %v721 = vadd.f32 %v650, %v720
    %722 = vmatmul.f32.gmra.mxu0 %v671
    %v723 = vpop.f32.mrf.mxu0
    %v724 = vadd.f32 %v651, %v723
    %725 = vmatmul.f32.gmra.mxu0 %v674
    %v726 = vpop.f32.mrf.mxu0
    %v727 = vadd.f32 %v652, %v726
    %728 = vmatmul.f32.gmra.mxu0 %v677
    %v729 = vpop.f32.mrf.mxu0
    %v730 = vadd.f32 %v653, %v729
    %731 = vmatmul.f32.gmra.mxu0 %v680
    %v732 = vpop.f32.mrf.mxu0
    %v733 = vadd.f32 %v654, %v732
    %734 = vmatmul.f32.gmra.mxu0 %v683
    %v735 = vpop.f32.mrf.mxu0
    %v736 = vadd.f32 %v655, %v735
    %737 = vmatmul.f32.gmra.mxu0 %v686
    %v738 = vpop.f32.mrf.mxu0
    %v739 = vadd.f32 %v656, %v738
    %740 = vmatmul.f32.gmra.mxu0 %v689
    %v741 = vpop.f32.mrf.mxu0
    %v742 = vadd.f32 %v657, %v741
    %743 = vmatmul.f32.gmra.mxu0 %v692
    %v744 = vpop.f32.mrf.mxu0
    %v745 = vadd.f32 %v658, %v744
    %746 = vmatmul.f32.gmra.mxu0 %v695
    %v747 = vpop.f32.mrf.mxu0
    %v748 = vadd.f32 %v659, %v747
    %749 = vdwg.mxu0
    %v750 = vmax.f32 %v715, 0.0
    %v751 = vmax.f32 %v718, 0.0
    %v752 = vmax.f32 %v721, 0.0
    %v753 = vmax.f32 %v724, 0.0
    %v754 = vmax.f32 %v727, 0.0
    %v755 = vmax.f32 %v730, 0.0
    %v756 = vmax.f32 %v733, 0.0
    %v757 = vmax.f32 %v736, 0.0
    %v758 = vmax.f32 %v739, 0.0
    %v759 = vmax.f32 %v742, 0.0
    %v760 = vmax.f32 %v745, 0.0
    %v761 = vmax.f32 %v748, 0.0
    %v762 = vsel %vm76, %v750, -inf
    %763 = vmax.xlane.f32.xlu0 %v762
    %v764 = vpop.xlane.xlu0 %763
    %v765 = vsel %vm76, %v751, -inf
    %766 = vmax.xlane.f32.xlu0 %v765
    %v767 = vpop.xlane.xlu0 %766
    %v768 = vsel %vm76, %v752, -inf
    %769 = vmax.xlane.f32.xlu0 %v768
    %v770 = vpop.xlane.xlu0 %769
    %v771 = vsel %vm76, %v753, -inf
    %772 = vmax.xlane.f32.xlu0 %v771
    %v773 = vpop.xlane.xlu0 %772
    %v774 = vsel %vm76, %v754, -inf
    %775 = vmax.xlane.f32.xlu0 %v774
    %v776 = vpop.xlane.xlu0 %775
    %v777 = vsel %vm76, %v755, -inf
    %778 = vmax.xlane.f32.xlu0 %v777
    %v779 = vpop.xlane.xlu0 %778
    %v780 = vsel %vm76, %v756, -inf
    %781 = vmax.xlane.f32.xlu0 %v780
    %v782 = vpop.xlane.xlu0 %781
    %v783 = vsel %vm76, %v757, -inf
    %784 = vmax.xlane.f32.xlu0 %v783
    %v785 = vpop.xlane.xlu0 %784
    %v786 = vsel %vm76, %v758, -inf
    %787 = vmax.xlane.f32.xlu0 %v786
    %v788 = vpop.xlane.xlu0 %787
    %v789 = vsel %vm76, %v759, -inf
    %790 = vmax.xlane.f32.xlu0 %v789
    %v791 = vpop.xlane.xlu0 %790
    %v792 = vsel %vm76, %v760, -inf
    %793 = vmax.xlane.f32.xlu0 %v792
    %v794 = vpop.xlane.xlu0 %793
    %v795 = vsel %vm76, %v761, -inf
    %796 = vmax.xlane.f32.xlu0 %v795
    %v797 = vpop.xlane.xlu0 %796
    %v798 = vld [vmem:[%s18] sm:$0x3]
    %v799 = vld [vmem:[%s17] sm:$0xff]
    %v800 = vld [vmem:[%s17 + $0x8] sm:$0xff]
    %v801 = vld [vmem:[%s17 + $0x10] sm:$0xff]
    %v802 = vld [vmem:[%s17 + $0x18] sm:$0xff]
    %v803 = vld [vmem:[%s17 + $0x20] sm:$0xff]
    %v804 = vld [vmem:[%s17 + $0x28] sm:$0xff]
    %v805 = vld [vmem:[%s17 + $0x30] sm:$0xff]
    %v806 = vld [vmem:[%s17 + $0x38] sm:$0xff]
    %v807 = vld [vmem:[%s17 + $0x40] sm:$0xff]
    %v808 = vld [vmem:[%s17 + $0x48] sm:$0xff]
    %v809 = vld [vmem:[%s17 + $0x50] sm:$0xff]
    %v810 = vld [vmem:[%s17 + $0x58] sm:$0xff]
    %v811 = vmul.f32 %v764, %v799
    %v812 = vmul.f32 %v767, %v800
    %v813 = vmul.f32 %v770, %v801
    %v814 = vmul.f32 %v773, %v802
    %v815 = vmul.f32 %v776, %v803
    %v816 = vmul.f32 %v779, %v804
    %v817 = vmul.f32 %v782, %v805
    %v818 = vmul.f32 %v785, %v806
    %v819 = vmul.f32 %v788, %v807
    %v820 = vmul.f32 %v791, %v808
    %v821 = vmul.f32 %v794, %v809
    %v822 = vmul.f32 %v797, %v810
    %v823 = vld [vmem:[%s19] sm:$0x1]
    %v825 = vperm.slane %v823, 0
    %vm827 = vcmask 785408
    %v829 = vsel %vm827, %v798, 0
    %831 = vmatpush.msra.mxu0 0.0
    %832 = vmatpush.msra.mxu0 0.0
    %833 = vmatpush.msra.mxu0 0.0
    %834 = vmatpush.msra.mxu0 0.0
    %835 = vmatpush.msra.mxu0 %v822
    %836 = vmatpush.msra.mxu0 %v821
    %837 = vmatpush.msra.mxu0 %v820
    %838 = vmatpush.msra.mxu0 %v819
    %839 = vmatpush.msra.mxu0 %v818
    %840 = vmatpush.msra.mxu0 %v817
    %841 = vmatpush.msra.mxu0 %v816
    %842 = vmatpush.msra.mxu0 %v815
    %843 = vmatpush.msra.mxu0 %v814
    %844 = vmatpush.msra.mxu0 %v813
    %845 = vmatpush.msra.mxu0 %v812
    %846 = vmatpush.msra.mxu0 %v811
    %847 = vmatmul.f32.gmra.mxu0 %v829
    %v848 = vpop.f32.mrf.mxu0
    %v849 = vadd.f32 %v825, %v848
    %850 = vdwg.mxu0
    %vm851 = vcmask 9216
    %v852 = vsel %vm851, %v849, -inf
    %853 = vmax.xlane.f32.xlu0 %v852
    %v854 = vpop.xlane.xlu0 %853
    %v855 = vsub.f32 %v849, %v854
    %v856 = vmul.f32 %v855, 1.442695
    %v857 = vpow.pop %v856
    %v858 = vsel %vm851, %v857, 0.0
    %859 = vadd.xlane.f32.xlu0 %v858
    %v860 = vpop.xlane.xlu0 %859
    %v861 = vrcp.pop %v860
    %v862 = vmul.f32 %v860, %v861
    %v863 = vsub.f32 1.0, %v862
    %v864 = vmul.f32 %v861, %v863
    %v865 = vadd.f32 %v861, %v864
    %vm866 = vweird.f32 %v860
    %vm867 = vweird.f32 %v861
    %vm868 = vmor %vm866, %vm867
    %v869 = vsel %vm868, %v861, %v865
    %v870 = vand.u32 2147483647, %v860
    %vm871 = vcmp.eq.f32.partialorder %v870, 8.507059e+37
    %v872 = vand.u32 %v860, 2147483648
    %v873 = vor.u32 1.1754944e-38, %v872
    %v874 = vsel %vm871, %v873, %v869
    %v875 = vmul.f32 %v857, %v874
    %876 = vst.msk [vmem:[#allocation2] sm:$0x3] %vm851, %v875
    // Predicated region
    $region82: #{mult_att_cnn_forward.1} parent=1 // pred_check
      _
    $region83: #{mult_att_cnn_forward.1} parent=1 // pred_check_branch
      %878 = sbr.rel (0) target = $region85
    $region84: #{mult_att_cnn_forward.1} parent=1 // pred_region
      %880 = vsyncadd [#allocation3], 0
      %s882 = sshll.u32 [#allocation2], 4
      %s883 = int_to_ptr.vmem [resolvable:$true] %s882
      %s884 = sshll.u32 %s20, 4
      %s885 = int_to_ptr.hbm [resolvable:$true] %s884
      %887 = dma.vmem_to_hbm [thread:$0]  %s883, 32, %s885, [#allocation3]
    $region85: #{mult_att_cnn_forward.1} parent=1 // pred_fallthru
      _
    // Predicated region
    $region86: #{mult_att_cnn_forward.1} parent=1 // pred_check
      _
    $region87: #{mult_att_cnn_forward.1} parent=1 // pred_check_branch
      %889 = sbr.rel (0) target = $region89
    $region88: #{mult_att_cnn_forward.1} parent=1 // pred_region
      %891 = dma.done [#allocation3], 32
    $region89: #{mult_att_cnn_forward.1} parent=1 // pred_fallthru
      _
    %892 = vsyncpa [#allocation3], 1

</llo_original>
